<compile_context>
chip_gen: v7x
topology: tpu7x:2x2x1
jax: 0.10.0
libtpu: 0.0.40
codegen_flags: <defaults>
</compile_context>

<pallas_src>
import jax
import jax.numpy as jnp
from jax.experimental import pallas as pl
from jax.experimental.pallas import tpu as pltpu


def _round_up(n, m):
    return ((n + m - 1) // m) * m


def lnnet_kernel(x_ref, w1t_ref, w2t_ref, out_ref, hid_ref):
    # x_ref  : (TM, in_p)     f32 or bf16 -- cast to bf16 here (VPU) for the MXU
    # w1t_ref: (in_p, hid_p)  bf16 (pre-transposed at init -> plain NN matmul)
    # w2t_ref: (hid_p, out_p) bf16
    x = x_ref[...].astype(jnp.bfloat16)
    hid = jnp.dot(x, w1t_ref[...], preferred_element_type=jnp.float32)
    hid_ref[...] = hid.astype(hid_ref.dtype)
    out = jnp.dot(hid.astype(jnp.bfloat16), w2t_ref[...],
                  preferred_element_type=jnp.float32)
    out_ref[...] = out.astype(out_ref.dtype)


def _pad2d(a, shape):
    """Zero-pad a 2-D array up to `shape` (single fused pad; no-op if aligned)."""
    if a.shape == shape:
        return a
    return jnp.pad(a, ((0, shape[0] - a.shape[0]), (0, shape[1] - a.shape[1])))


def prepare_lnnet_params(w_in_hid, w_hid_out):
    """One-time weight prep (model init, NOT per forward call).

    Casts the PyTorch-layout (out_features, in_features) weights to bf16, transposes
    them to (K, N), and zero-pads feature dims to multiples of 128 (lane-dense).
    Zero padding is exact for bias-free linear layers.
    """
    hid_dim, in_dim = w_in_hid.shape
    out_dim, hid_dim2 = w_hid_out.shape
    assert hid_dim2 == hid_dim
    in_p, hid_p, out_p = (_round_up(d, 128) for d in (in_dim, hid_dim, out_dim))
    w1t = _pad2d(w_in_hid.astype(jnp.bfloat16).T, (in_p, hid_p))
    w2t = _pad2d(w_hid_out.astype(jnp.bfloat16).T, (hid_p, out_p))
    return {"w1t": w1t, "w2t": w2t,
            "in_dim": in_dim, "hid_dim": hid_dim, "out_dim": out_dim}


def _pick_tm(b16, tm_target):
    """Batch tile: multiple of 16, >=2 grid steps when possible (v7x megacore +
    pipeline overlap), minimal over-padding, bigger tiles for big B."""
    tm_target = max(16, min(_round_up(tm_target, 16), b16))
    candidates = []
    for cand in range(16, tm_target + 1, 16):
        ntiles = -(-b16 // cand)
        if ntiles < 2 and b16 > 16:
            continue  # keep >=2 tiles so the "parallel" axis can shard across cores
        pad = ntiles * cand - b16
        candidates.append((cand, ntiles, pad))
    if not candidates:
        return b16
    # Cost: rows actually processed (b16 + pad) plus ~32 rows-equivalent fixed cost
    # per grid step (~0.35us each); tie-break toward larger tiles.
    return min(candidates, key=lambda c: (c[1] * c[0] + 32 * c[1], -c[0]))[0]


def lnnet_forward(x, params, *, tm=512, out_dtype=jnp.bfloat16):
    """Pallas LNNet.forward: hid = x @ W1^T; out = hid @ W2^T; returns (out, hid).

    x: (B, in_dim); params from prepare_lnnet_params(). Outputs are returned in
    `out_dtype` (default bf16 to halve HBM writeback; use jnp.float32 if needed).
    """
    B, in_dim = x.shape
    assert in_dim == params["in_dim"]
    w1t, w2t = params["w1t"], params["w2t"]
    in_p, hid_p = w1t.shape
    _, out_p = w2t.shape
    hid_dim, out_dim = params["hid_dim"], params["out_dim"]

    b16 = _round_up(B, 16)
    TM = _pick_tm(b16, tm)
    B_p = _round_up(b16, TM)
    n_tiles = B_p // TM

    if x.shape == (B_p, in_p):
        x_p = x  # aligned: feed f32 directly; cast to bf16 inside the kernel
    else:
        # Padding needed anyway -> pad + cast to bf16 in one fused wrapper op so
        # the kernel reads half the x bytes.
        x_p = _pad2d(x.astype(jnp.bfloat16), (B_p, in_p))

    out_itemsize = jnp.dtype(out_dtype).itemsize
    flops = 2 * B_p * (in_p * hid_p + hid_p * out_p)
    bytes_accessed = (x_p.size * x_p.dtype.itemsize
                      + (w1t.size + w2t.size) * 2
                      + B_p * (hid_p + out_p) * out_itemsize)
    cost = pl.CostEstimate(flops=flops, transcendentals=0,
                           bytes_accessed=bytes_accessed)

    # VMEM footprint: (double-buffered) resident weights + double-buffered x/out/hid
    # tiles + f32 intermediates; keep the limit under 64 MiB (v7x physical per-TC).
    # TODO(synk): for much larger weights, add pipeline_mode=pl.Buffered(1) to the
    # weight BlockSpecs (constant index_map => second pipeline buffer is wasted VMEM).
    footprint = (2 * (w1t.size + w2t.size) * 2
                 + 2 * TM * in_p * x_p.dtype.itemsize
                 + 2 * TM * (hid_p + out_p) * out_itemsize
                 + TM * (hid_p + out_p) * 4)
    vmem_limit = int(min(64 << 20, max(32 << 20, int(footprint * 1.5) + (4 << 20))))

    out_pad, hid_pad = pl.pallas_call(
        lnnet_kernel,
        out_shape=(
            jax.ShapeDtypeStruct((B_p, out_p), out_dtype),
            jax.ShapeDtypeStruct((B_p, hid_p), out_dtype),
        ),
        grid_spec=pltpu.PrefetchScalarGridSpec(
            num_scalar_prefetch=0,
            grid=(n_tiles,),
            in_specs=[
                # x: one batch tile per grid step (software-pipelined).
                pl.BlockSpec((TM, in_p), lambda i: (i, 0)),
                # Weights: constant block index -> stay resident in VMEM.
                pl.BlockSpec((in_p, hid_p), lambda i: (0, 0)),
                pl.BlockSpec((hid_p, out_p), lambda i: (0, 0)),
            ],
            out_specs=(
                pl.BlockSpec((TM, out_p), lambda i: (i, 0)),
                pl.BlockSpec((TM, hid_p), lambda i: (i, 0)),
            ),
        ),
        compiler_params=pltpu.CompilerParams(
            # Batch tiles are independent -> megacore sharding on v7x.
            dimension_semantics=("parallel",),
            vmem_limit_bytes=vmem_limit,
        ),
        cost_estimate=cost,
    )(x_p, w1t, w2t)

    out = out_pad[:B, :out_dim]
    hid = hid_pad[:B, :hid_dim]
    return out, hid


if __name__ == "__main__":
    # LNNet(in_dim=128, hid_dim=256, out_dim=128), batch 512 (MXU/lane-friendly).
    B, in_dim, hid_dim, out_dim = 512, 128, 256, 128

    key = jax.random.PRNGKey(0)
    kx, k1, k2 = jax.random.split(key, 3)

    x = jax.random.normal(kx, (B, in_dim), dtype=jnp.float32)

    # Deterministic init mimicking nn.Linear's uniform(-1/sqrt(fan_in), 1/sqrt(fan_in)),
    # stored in PyTorch layout (out_features, in_features).
    bound1 = 1.0 / jnp.sqrt(jnp.float32(in_dim))
    bound2 = 1.0 / jnp.sqrt(jnp.float32(hid_dim))
    w_in_hid = jax.random.uniform(
        k1, (hid_dim, in_dim), minval=-bound1, maxval=bound1, dtype=jnp.float32)
    w_hid_out = jax.random.uniform(
        k2, (out_dim, hid_dim), minval=-bound2, maxval=bound2, dtype=jnp.float32)

    # One-time weight prep ("model init"); the per-call path only moves x + outputs.
    params = prepare_lnnet_params(w_in_hid, w_hid_out)

    out, hid = lnnet_forward(x, params)
    jax.block_until_ready((out, hid))
    assert out.shape == (B, out_dim) and hid.shape == (B, hid_dim)

    # Reference with the same bf16-operand / f32-accumulate numerics as the kernel.
    xb = x.astype(jnp.bfloat16)
    hid_ref = jnp.dot(xb, w_in_hid.astype(jnp.bfloat16).T,
                      preferred_element_type=jnp.float32)
    out_ref = jnp.dot(hid_ref.astype(jnp.bfloat16), w_hid_out.astype(jnp.bfloat16).T,
                      preferred_element_type=jnp.float32)
    assert jnp.allclose(hid.astype(jnp.float32), hid_ref, atol=3e-2, rtol=3e-2)
    assert jnp.allclose(out.astype(jnp.float32), out_ref, atol=3e-2, rtol=3e-2)

    # Loose sanity check against the full-f32 PyTorch-equivalent math.
    hid_f32 = x @ w_in_hid.T
    out_f32 = hid_f32 @ w_hid_out.T
    assert jnp.allclose(hid.astype(jnp.float32), hid_f32, atol=1.5e-1, rtol=1.5e-1)
    assert jnp.allclose(out.astype(jnp.float32), out_f32, atol=1.5e-1, rtol=1.5e-1)

    print("KERNEL_OK")
</pallas_src>

<mosaic_0001>
module attributes {stable_mosaic.version = 11 : i64} {
  func.func @lnnet_kernel(%arg0: i32, %arg1: memref<256x128xf32, #tpu.memory_space<vmem>>, %arg2: memref<128x256xbf16, #tpu.memory_space<vmem>>, %arg3: memref<256x128xbf16, #tpu.memory_space<vmem>>, %arg4: memref<256x128xbf16, #tpu.memory_space<vmem>>, %arg5: memref<256x256xbf16, #tpu.memory_space<vmem>>) attributes {dimension_semantics = [#tpu.dimension_semantics<parallel>], iteration_bounds = array<i64: 2>, scalar_prefetch = 0 : i64, scratch_operands = 0 : i64, tpu.core_type = #tpu.core_type<tc>, window_params = [{transform_indices = @transform_0, window_bounds = array<i64: 256, 128>}, {pipeline_mode = #tpu.pipeline_mode<synchronous>, transform_indices = @transform_1, window_bounds = array<i64: 128, 256>}, {pipeline_mode = #tpu.pipeline_mode<synchronous>, transform_indices = @transform_2, window_bounds = array<i64: 256, 128>}, {transform_indices = @transform_3, window_bounds = array<i64: 256, 128>}, {transform_indices = @transform_4, window_bounds = array<i64: 256, 256>}]} {
    %c0 = arith.constant 0 : index
    %c0_0 = arith.constant 0 : index
    %0 = vector.load %arg1[%c0, %c0_0] : memref<256x128xf32, #tpu.memory_space<vmem>>, vector<256x128xf32>
    %1 = arith.truncf %0 : vector<256x128xf32> to vector<256x128xbf16>
    %c0_1 = arith.constant 0 : index
    %c0_2 = arith.constant 0 : index
    %2 = vector.load %arg2[%c0_1, %c0_2] : memref<128x256xbf16, #tpu.memory_space<vmem>>, vector<128x256xbf16>
    %cst = arith.constant dense<0.000000e+00> : vector<256x256xf32>
    %3 = tpu.matmul %1, %2, %cst {dimension_numbers = #tpu.dot_dimension_numbers<[1], [0], [0], [1], [0, 0, 1, 1], [], []>} : vector<256x128xbf16>, vector<128x256xbf16>, vector<256x256xf32> -> vector<256x256xf32>
    %4 = arith.truncf %3 : vector<256x256xf32> to vector<256x256xbf16>
    %c0_3 = arith.constant 0 : index
    %c0_4 = arith.constant 0 : index
    %5 = vector.load %arg5[%c0_3, %c0_4] : memref<256x256xbf16, #tpu.memory_space<vmem>>, vector<256x256xbf16>
    tpu.vector_store %arg5[%c0_3, %c0_4], %4 {strides = array<i32>} : memref<256x256xbf16, #tpu.memory_space<vmem>>, vector<256x256xbf16>,
    %6 = arith.truncf %3 : vector<256x256xf32> to vector<256x256xbf16>
    %c0_5 = arith.constant 0 : index
    %c0_6 = arith.constant 0 : index
    %7 = vector.load %arg3[%c0_5, %c0_6] : memref<256x128xbf16, #tpu.memory_space<vmem>>, vector<256x128xbf16>
    %cst_7 = arith.constant dense<0.000000e+00> : vector<256x128xf32>
    %8 = tpu.matmul %6, %7, %cst_7 {dimension_numbers = #tpu.dot_dimension_numbers<[1], [0], [0], [1], [0, 0, 1, 1], [], []>} : vector<256x256xbf16>, vector<256x128xbf16>, vector<256x128xf32> -> vector<256x128xf32>
    %9 = arith.truncf %8 : vector<256x128xf32> to vector<256x128xbf16>
    %c0_8 = arith.constant 0 : index
    %c0_9 = arith.constant 0 : index
    %10 = vector.load %arg4[%c0_8, %c0_9] : memref<256x128xbf16, #tpu.memory_space<vmem>>, vector<256x128xbf16>
    tpu.vector_store %arg4[%c0_8, %c0_9], %9 {strides = array<i32>} : memref<256x128xbf16, #tpu.memory_space<vmem>>, vector<256x128xbf16>,
    return
  }
  func.func @transform_0(%arg0: i32) -> (i32, i32) {
    %c0_i32 = arith.constant 0 : i32
    %c0_i32_0 = arith.constant 0 : i32
    return %arg0, %c0_i32 : i32, i32
  }
  func.func @transform_1(%arg0: i32) -> (i32, i32) {
    %c0_i32 = arith.constant 0 : i32
    %c0_i32_0 = arith.constant 0 : i32
    %c0_i32_1 = arith.constant 0 : i32
    return %c0_i32, %c0_i32_0 : i32, i32
  }
  func.func @transform_2(%arg0: i32) -> (i32, i32) {
    %c0_i32 = arith.constant 0 : i32
    %c0_i32_0 = arith.constant 0 : i32
    %c0_i32_1 = arith.constant 0 : i32
    return %c0_i32, %c0_i32_0 : i32, i32
  }
  func.func @transform_3(%arg0: i32) -> (i32, i32) {
    %c0_i32 = arith.constant 0 : i32
    %c0_i32_0 = arith.constant 0 : i32
    return %arg0, %c0_i32 : i32, i32
  }
  func.func @transform_4(%arg0: i32) -> (i32, i32) {
    %c0_i32 = arith.constant 0 : i32
    %c0_i32_0 = arith.constant 0 : i32
    return %arg0, %c0_i32 : i32, i32
  }
}

</mosaic_0001>

<llo_original>
// kernel: tpu_custom_call.1
$region0: #{tpu_custom_call.1}
  #allocation0 [shape = 'u32[]', space=smem, size = 0x4, offset = 0x4, fixed_abs, tag = 'smem constant byte address 0x4 - core index']
  #allocation1 [shape = 'u32[144,128]{1,0:T(1,128)}', space=vmem, size = 0x12000, scoped, tag = 'internal scratch']
  %s0 = inlined_call_operand.hbm [shape: f32[512,128], index: 0, kind: input, shape index: {}]
  %s1 = inlined_call_operand.hbm [shape: bf16[128,256], index: 1, kind: input, shape index: {}]
  %s2 = inlined_call_operand.hbm [shape: bf16[256,128], index: 2, kind: input, shape index: {}]
  %s3 = inlined_call_operand.hbm [shape: bf16[512,128], index: 3, kind: output, shape index: {0}]
  %s4 = inlined_call_operand.hbm [shape: bf16[512,256], index: 4, kind: output, shape index: {1}]
  %5 = xla_tuple %s3, %s4
  %s6 = sld [smem:[#allocation0]]
  $region65: #{tpu_custom_call.1} parent=0
    _
  %s8 = ssub.s32 1, %s6
  %s9 = scalar_select 0, %s8, %s6
  $region1: #{tpu_custom_call.1} parent=0
    #allocation2 [shape = 'u8[262144]{0}', space=vmem, size = 0x40000, scoped, tag = 'input window, operand 0']
    #allocation3 [shape = 's32[2]{0}', space=sflag, size = 0x8, scoped, tag = 'scoped memory for tpu_custom_call.1']
    #allocation4 [shape = 's32[2]{0}', space=sflag, size = 0x8, scoped, tag = 'scoped memory for tpu_custom_call.1']
    #allocation5 [shape = 'u8[65536]{0}', space=vmem, size = 0x10000, scoped, tag = 'input window, operand 1, single buffered']
    #allocation6 [shape = 's32[1]{0}', space=sflag, size = 0x4, scoped, tag = 'scoped memory for tpu_custom_call.1']
    #allocation7 [shape = 'u8[65536]{0}', space=vmem, size = 0x10000, scoped, tag = 'input window, operand 2, single buffered']
    #allocation8 [shape = 'u8[131072]{0}', space=vmem, size = 0x20000, scoped, tag = 'output window, operand 0']
    #allocation9 [shape = 'u8[262144]{0}', space=vmem, size = 0x40000, scoped, tag = 'output window, operand 1']
    #allocation10 [shape = 's32[2]{0}', space=sflag, size = 0x8, scoped, tag = 'scoped memory for tpu_custom_call.1']
    %10 = vsyncpa [#allocation3], 0
    %s11 = scalar_lea.sflag [#allocation3], 1
    %12 = vsyncpa %s11, 0
    %13 = vsyncpa [#allocation6], 0
    %14 = vsyncpa [#allocation4], 0
    %s15 = scalar_lea.sflag [#allocation4], 1
    %16 = vsyncpa %s15, 0
    %17 = vsyncpa [#allocation10], 0
    %s18 = scalar_lea.sflag [#allocation10], 1
    %19 = vsyncpa %s18, 0
    loop: start=0, step=1, limit=4
    $region2: #{tpu_custom_call.1} parent=1 // loop_pre_header
      _
    $region3: #{tpu_custom_call.1} parent=1 // loop_header
      %s21 = sphi 0, %s25
      %p22 = scmp.ge.s32.totalorder %s21, 4
      %s31 = sphi 0, %s33
      %s34 = sphi 0, %s31
      %s35 = sphi 0, %s34
      %s51 = sphi 0, %s35
      %s55 = sphi 0, %s55
      %s57 = sphi 0, %s55
      %s58 = sphi 0, %s57
      %s72 = sphi 0, %s58
      %s76 = sphi 0, %s76
      %s78 = sphi 0, %s76
      %s79 = sphi 0, %s78
      %s93 = sphi 0, %s79
      %s99 = sphi 0, %s101
      %s102 = sphi 0, %s99
      %s103 = sphi 0, %s102
      %s119 = sphi 0, %s103
      %s125 = sphi 0, %s127
      %s128 = sphi 0, %s125
      %s129 = sphi 0, %s128
      %s145 = sphi 0, %s129
    $region4: #{tpu_custom_call.1} parent=1 // loop_header_branch
      %24 = sbr.rel (%p22) target = $region8
    $region5: #{tpu_custom_call.1} parent=1 // loop_body
      %s26 = ssub.s32 %s21, 1
      %s27 = ssub.s32 %s21, 2
      %s28 = sadd.s32 %s21, 1
      %s29 = ssub.s32 %s21, %s28
      %p30 = scmp.eq.s32.totalorder %s29, 0
      %s32 = sadd.s32 %s31, 1
      %s33 = scalar_select %p30, %s31, %s32
      %p36 = pneg %p30
      %p37 = scmp.eq.s32.totalorder %s21, 1
      %p38 = por %p36, %p37
      %p39 = scmp.ne.s32.totalorder %s31, %s34
      %p40 = scmp.eq.s32.totalorder %s21, 0
      %p41 = por %p39, %p40
      %p42 = scmp.ne.s32.totalorder %s31, %s34
      %p43 = scmp.eq.s32.totalorder %s26, 1
      %p44 = por %p42, %p43
      %p45 = scmp.ne.s32.totalorder %s34, %s35
      %p46 = scmp.eq.s32.totalorder %s26, 0
      %p47 = por %p45, %p46
      %p48 = scmp.ne.s32.totalorder %s34, %s35
      %p49 = scmp.eq.s32.totalorder %s27, 1
      %p50 = por %p48, %p49
      %p52 = scmp.ne.s32.totalorder %s35, %s51
      %p53 = scmp.eq.s32.totalorder %s27, 0
      %p54 = por %p52, %p53
      %s56 = sadd.s32 %s55, 1
      %p59 = scmp.eq.s32.totalorder %s21, 1
      %p60 = scmp.ne.s32.totalorder %s55, %s57
      %p61 = scmp.eq.s32.totalorder %s21, 0
      %p62 = por %p60, %p61
      %p63 = scmp.ne.s32.totalorder %s55, %s57
      %p64 = scmp.eq.s32.totalorder %s26, 1
      %p65 = por %p63, %p64
      %p66 = scmp.ne.s32.totalorder %s57, %s58
      %p67 = scmp.eq.s32.totalorder %s26, 0
      %p68 = por %p66, %p67
      %p69 = scmp.ne.s32.totalorder %s57, %s58
      %p70 = scmp.eq.s32.totalorder %s27, 1
      %p71 = por %p69, %p70
      %p73 = scmp.ne.s32.totalorder %s58, %s72
      %p74 = scmp.eq.s32.totalorder %s27, 0
      %p75 = por %p73, %p74
      %s77 = sadd.s32 %s76, 1
      %p80 = scmp.eq.s32.totalorder %s21, 1
      %p81 = scmp.ne.s32.totalorder %s76, %s78
      %p82 = scmp.eq.s32.totalorder %s21, 0
      %p83 = por %p81, %p82
      %p84 = scmp.ne.s32.totalorder %s76, %s78
      %p85 = scmp.eq.s32.totalorder %s26, 1
      %p86 = por %p84, %p85
      %p87 = scmp.ne.s32.totalorder %s78, %s79
      %p88 = scmp.eq.s32.totalorder %s26, 0
      %p89 = por %p87, %p88
      %p90 = scmp.ne.s32.totalorder %s78, %s79
      %p91 = scmp.eq.s32.totalorder %s27, 1
      %p92 = por %p90, %p91
      %p94 = scmp.ne.s32.totalorder %s79, %s93
      %p95 = scmp.eq.s32.totalorder %s27, 0
      %p96 = por %p94, %p95
      %s97 = ssub.s32 %s21, %s28
      %p98 = scmp.eq.s32.totalorder %s97, 0
      %s100 = sadd.s32 %s99, 1
      %s101 = scalar_select %p98, %s99, %s100
      %p104 = pneg %p98
      %p105 = scmp.eq.s32.totalorder %s21, 1
      %p106 = por %p104, %p105
      %p107 = scmp.ne.s32.totalorder %s99, %s102
      %p108 = scmp.eq.s32.totalorder %s21, 0
      %p109 = por %p107, %p108
      %p110 = scmp.ne.s32.totalorder %s99, %s102
      %p111 = scmp.eq.s32.totalorder %s26, 1
      %p112 = por %p110, %p111
      %p113 = scmp.ne.s32.totalorder %s102, %s103
      %p114 = scmp.eq.s32.totalorder %s26, 0
      %p115 = por %p113, %p114
      %p116 = scmp.ne.s32.totalorder %s102, %s103
      %p117 = scmp.eq.s32.totalorder %s27, 1
      %p118 = por %p116, %p117
      %p120 = scmp.ne.s32.totalorder %s103, %s119
      %p121 = scmp.eq.s32.totalorder %s27, 0
      %p122 = por %p120, %p121
      %s123 = ssub.s32 %s21, %s28
      %p124 = scmp.eq.s32.totalorder %s123, 0
      %s126 = sadd.s32 %s125, 1
      %s127 = scalar_select %p124, %s125, %s126
      %p130 = pneg %p124
      %p131 = scmp.eq.s32.totalorder %s21, 1
      %p132 = por %p130, %p131
      %p133 = scmp.ne.s32.totalorder %s125, %s128
      %p134 = scmp.eq.s32.totalorder %s21, 0
      %p135 = por %p133, %p134
      %p136 = scmp.ne.s32.totalorder %s125, %s128
      %p137 = scmp.eq.s32.totalorder %s26, 1
      %p138 = por %p136, %p137
      %p139 = scmp.ne.s32.totalorder %s128, %s129
      %p140 = scmp.eq.s32.totalorder %s26, 0
      %p141 = por %p139, %p140
      %p142 = scmp.ne.s32.totalorder %s128, %s129
      %p143 = scmp.eq.s32.totalorder %s27, 1
      %p144 = por %p142, %p143
      %p146 = scmp.ne.s32.totalorder %s129, %s145
      %p147 = scmp.eq.s32.totalorder %s27, 0
      %p148 = por %p146, %p147
      %p149 = scmp.le.s32.totalorder 1, %s21
      %p150 = scmp.lt.s32.totalorder %s21, 3
      %p151 = pnand %p149, %p150
      %p152 = pneg %p151
      // Predicated region
      $region9: #{tpu_custom_call.1} parent=5 // pred_check
        _
      $region10: #{tpu_custom_call.1} parent=5 // pred_check_branch
        %154 = sbr.rel (%p151) target = $region12
      $region11: #{tpu_custom_call.1} parent=5 // pred_region
        %s155 = ssub.s32 %s21, 1
        // Predicated region
        $region13: #{tpu_custom_call.1} parent=11 // pred_check
          %p156 = pneg %p68
        $region14: #{tpu_custom_call.1} parent=11 // pred_check_branch
          %158 = sbr.rel (%p156) target = $region16
        $region15: #{tpu_custom_call.1} parent=11 // pred_region
          %s160 = ssub.s32 2048, 2048
          %161 = vsyncadd [#allocation6], %s160
          %s162 = sshll.u32 [#allocation5], 4
          %s163 = int_to_ptr.vmem [resolvable:$true] %s162
          %168 = dma.hbm_to_vmem [thread:$0]  %s1, 2048, %s163, [#allocation6], 128, 128, 8
        $region16: #{tpu_custom_call.1} parent=11 // pred_fallthru
          _
        // Predicated region
        $region17: #{tpu_custom_call.1} parent=11 // pred_check
          %p169 = pneg %p89
        $region18: #{tpu_custom_call.1} parent=11 // pred_check_branch
          %171 = sbr.rel (%p169) target = $region20
        $region19: #{tpu_custom_call.1} parent=11 // pred_region
          %s173 = ssub.s32 2048, 2048
          %174 = vsyncadd [#allocation6], %s173
          %s175 = sshll.u32 [#allocation7], 4
          %s176 = int_to_ptr.vmem [resolvable:$true] %s175
          %181 = dma.hbm_to_vmem [thread:$0]  %s2, 2048, %s176, [#allocation6], 64, 64, 4
        $region20: #{tpu_custom_call.1} parent=11 // pred_fallthru
          _
      $region12: #{tpu_custom_call.1} parent=5 // pred_fallthru
        _
      %p182 = scmp.lt.s32.totalorder %s21, 2
      // Predicated region
      $region21: #{tpu_custom_call.1} parent=5 // pred_check
        %p183 = pneg %p182
      $region22: #{tpu_custom_call.1} parent=5 // pred_check_branch
        %185 = sbr.rel (%p183) target = $region24
      $region23: #{tpu_custom_call.1} parent=5 // pred_region
        // Predicated region
        $region25: #{tpu_custom_call.1} parent=23 // pred_check
          %p186 = pneg %p41
        $region26: #{tpu_custom_call.1} parent=23 // pred_check_branch
          %188 = sbr.rel (%p186) target = $region28
        $region27: #{tpu_custom_call.1} parent=23 // pred_region
          %s189 = sand.u32 %s31, 1
          %s190 = scalar_lea.sflag [#allocation3], %s189
          %s191 = sand.u32 %s31, 1
          %s192 = smul.addr %s191, 256
          %s193 = scalar_lea.vmem [#allocation2], %s192
          %s194 = smul.u32 32, %s21
          %s196 = ssub.s32 4096, 4096
          %197 = vsyncadd %s190, %s196
          %s198 = smul.addr %s194, 128
          %s199 = scalar_lea.hbm %s0, %s198
          %s200 = sshll.u32 %s193, 4
          %s201 = int_to_ptr.vmem [resolvable:$true] %s200
          %206 = dma.hbm_to_vmem [thread:$0]  %s199, 4096, %s201, %s190, 128, 128, 8
        $region28: #{tpu_custom_call.1} parent=23 // pred_fallthru
          _
      $region24: #{tpu_custom_call.1} parent=5 // pred_fallthru
        _
      %p207 = scmp.le.s32.totalorder 1, %s21
      %p208 = scmp.lt.s32.totalorder %s21, 3
      %p209 = pnand %p207, %p208
      %p210 = pneg %p209
      // Predicated region
      $region29: #{tpu_custom_call.1} parent=5 // pred_check
        _
      $region30: #{tpu_custom_call.1} parent=5 // pred_check_branch
        %212 = sbr.rel (%p209) target = $region32
      $region31: #{tpu_custom_call.1} parent=5 // pred_region
        %s213 = ssub.s32 %s21, 1
        %s214 = sand.u32 %s34, 1
        %s215 = scalar_lea.sflag [#allocation3], %s214
        %s216 = sand.u32 %s34, 1
        %s217 = smul.addr %s216, 256
        %s218 = scalar_lea.vmem [#allocation2], %s217
        // Predicated region
        $region33: #{tpu_custom_call.1} parent=31 // pred_check
          %p219 = pneg %p47
        $region34: #{tpu_custom_call.1} parent=31 // pred_check_branch
          %221 = sbr.rel (%p219) target = $region36
        $region35: #{tpu_custom_call.1} parent=31 // pred_region
          %222 = dma.done %s215, 4096
        $region36: #{tpu_custom_call.1} parent=31 // pred_fallthru
          _
        // Predicated region
        $region37: #{tpu_custom_call.1} parent=31 // pred_check
          %p223 = pneg %p68
        $region38: #{tpu_custom_call.1} parent=31 // pred_check_branch
          %225 = sbr.rel (%p223) target = $region40
        $region39: #{tpu_custom_call.1} parent=31 // pred_region
          %226 = dma.done [#allocation6], 2048
        $region40: #{tpu_custom_call.1} parent=31 // pred_fallthru
          _
        // Predicated region
        $region41: #{tpu_custom_call.1} parent=31 // pred_check
          %p227 = pneg %p89
        $region42: #{tpu_custom_call.1} parent=31 // pred_check_branch
          %229 = sbr.rel (%p227) target = $region44
        $region43: #{tpu_custom_call.1} parent=31 // pred_region
          %230 = dma.done [#allocation6], 2048
        $region44: #{tpu_custom_call.1} parent=31 // pred_fallthru
          _
        %s231 = sand.u32 %s34, 1
        %s232 = scalar_lea.sflag [#allocation3], %s231
        %s233 = sand.u32 %s34, 1
        %s234 = smul.addr %s233, 256
        %s235 = scalar_lea.vmem [#allocation2], %s234
        %p236 = pneg %p47
        %p237 = pneg %p44
        %p238 = pneg %p68
        %p239 = pneg %p65
        %p240 = pneg %p89
        %p241 = pneg %p86
        %p242 = pneg %p115
        %p243 = pneg %p112
        %s244 = sand.u32 %s102, 1
        %s245 = scalar_lea.sflag [#allocation4], %s244
        %s246 = sand.u32 %s102, 1
        %s247 = smul.addr %s246, 128
        %s248 = scalar_lea.vmem [#allocation8], %s247
        %p249 = pneg %p141
        %p250 = pneg %p138
        %s251 = sand.u32 %s128, 1
        %s252 = scalar_lea.sflag [#allocation10], %s251
        %s253 = sand.u32 %s128, 1
        %s254 = smul.addr %s253, 256
        %s255 = scalar_lea.vmem [#allocation9], %s254
        %s256 = smul.u32 32, %s26
        %s257 = smul.u32 32, %s26
        %s258 = smul.u32 32, %s26
        %v260 = vld [vmem:[%s218] sm:$0xff]
        %v261 = vld [vmem:[%s218 + $0x8] sm:$0xff]
        %v262 = vld [vmem:[%s218 + $0x10] sm:$0xff]
        %v263 = vld [vmem:[%s218 + $0x18] sm:$0xff]
        %v264 = vld [vmem:[%s218 + $0x20] sm:$0xff]
        %v265 = vld [vmem:[%s218 + $0x28] sm:$0xff]
        %v266 = vld [vmem:[%s218 + $0x30] sm:$0xff]
        %v267 = vld [vmem:[%s218 + $0x38] sm:$0xff]
        %v268 = vld [vmem:[%s218 + $0x40] sm:$0xff]
        %v269 = vld [vmem:[%s218 + $0x48] sm:$0xff]
        %v270 = vld [vmem:[%s218 + $0x50] sm:$0xff]
        %v271 = vld [vmem:[%s218 + $0x58] sm:$0xff]
        %v272 = vld [vmem:[%s218 + $0x60] sm:$0xff]
        %v273 = vld [vmem:[%s218 + $0x68] sm:$0xff]
        %v274 = vld [vmem:[%s218 + $0x70] sm:$0xff]
        %v275 = vld [vmem:[%s218 + $0x78] sm:$0xff]
        %v276 = vld [vmem:[%s218 + $0x80] sm:$0xff]
        %v277 = vld [vmem:[%s218 + $0x88] sm:$0xff]
        %v278 = vld [vmem:[%s218 + $0x90] sm:$0xff]
        %v279 = vld [vmem:[%s218 + $0x98] sm:$0xff]
        %v280 = vld [vmem:[%s218 + $0xa0] sm:$0xff]
        %v281 = vld [vmem:[%s218 + $0xa8] sm:$0xff]
        %v282 = vld [vmem:[%s218 + $0xb0] sm:$0xff]
        %v283 = vld [vmem:[%s218 + $0xb8] sm:$0xff]
        %v284 = vld [vmem:[%s218 + $0xc0] sm:$0xff]
        %v285 = vld [vmem:[%s218 + $0xc8] sm:$0xff]
        %v286 = vld [vmem:[%s218 + $0xd0] sm:$0xff]
        %v287 = vld [vmem:[%s218 + $0xd8] sm:$0xff]
        %v288 = vld [vmem:[%s218 + $0xe0] sm:$0xff]
        %v289 = vld [vmem:[%s218 + $0xe8] sm:$0xff]
        %v290 = vld [vmem:[%s218 + $0xf0] sm:$0xff]
        %v291 = vld [vmem:[%s218 + $0xf8] sm:$0xff]
        %v292 = vpack.c.bf16 %v261, %v260
        %v293 = vpack.c.bf16 %v263, %v262
        %v294 = vpack.c.bf16 %v265, %v264
        %v295 = vpack.c.bf16 %v267, %v266
        %v296 = vpack.c.bf16 %v269, %v268
        %v297 = vpack.c.bf16 %v271, %v270
        %v298 = vpack.c.bf16 %v273, %v272
        %v299 = vpack.c.bf16 %v275, %v274
        %v300 = vpack.c.bf16 %v277, %v276
        %v301 = vpack.c.bf16 %v279, %v278
        %v302 = vpack.c.bf16 %v281, %v280
        %v303 = vpack.c.bf16 %v283, %v282
        %v304 = vpack.c.bf16 %v285, %v284
        %v305 = vpack.c.bf16 %v287, %v286
        %v306 = vpack.c.bf16 %v289, %v288
        %v307 = vpack.c.bf16 %v291, %v290
        %v308 = vld [vmem:[#allocation5] sm:$0xff]
        %v309 = vld [vmem:[#allocation5 + $0x8] sm:$0xff]
        %v310 = vld [vmem:[#allocation5 + $0x10] sm:$0xff]
        %v311 = vld [vmem:[#allocation5 + $0x18] sm:$0xff]
        %v312 = vld [vmem:[#allocation5 + $0x20] sm:$0xff]
        %v313 = vld [vmem:[#allocation5 + $0x28] sm:$0xff]
        %v314 = vld [vmem:[#allocation5 + $0x30] sm:$0xff]
        %v315 = vld [vmem:[#allocation5 + $0x38] sm:$0xff]
        %v316 = vld [vmem:[#allocation5 + $0x40] sm:$0xff]
        %v317 = vld [vmem:[#allocation5 + $0x48] sm:$0xff]
        %v318 = vld [vmem:[#allocation5 + $0x50] sm:$0xff]
        %v319 = vld [vmem:[#allocation5 + $0x58] sm:$0xff]
        %v320 = vld [vmem:[#allocation5 + $0x60] sm:$0xff]
        %v321 = vld [vmem:[#allocation5 + $0x68] sm:$0xff]
        %v322 = vld [vmem:[#allocation5 + $0x70] sm:$0xff]
        %v323 = vld [vmem:[#allocation5 + $0x78] sm:$0xff]
        %v340 = vunpack.c.l.b16 %v308
        %v341 = vunpack.c.h.b16 %v308
        %v342 = vunpack.c.l.b16 %v309
        %v343 = vunpack.c.h.b16 %v309
        %v344 = vunpack.c.l.b16 %v310
        %v345 = vunpack.c.h.b16 %v310
        %v346 = vunpack.c.l.b16 %v311
        %v347 = vunpack.c.h.b16 %v311
        %v348 = vunpack.c.l.b16 %v312
        %v349 = vunpack.c.h.b16 %v312
        %v350 = vunpack.c.l.b16 %v313
        %v351 = vunpack.c.h.b16 %v313
        %v352 = vunpack.c.l.b16 %v314
        %v353 = vunpack.c.h.b16 %v314
        %v354 = vunpack.c.l.b16 %v315
        %v355 = vunpack.c.h.b16 %v315
        %v356 = vunpack.c.l.b16 %v316
        %v357 = vunpack.c.h.b16 %v316
        %v358 = vunpack.c.l.b16 %v317
        %v359 = vunpack.c.h.b16 %v317
        %v360 = vunpack.c.l.b16 %v318
        %v361 = vunpack.c.h.b16 %v318
        %v362 = vunpack.c.l.b16 %v319
        %v363 = vunpack.c.h.b16 %v319
        %v364 = vunpack.c.l.b16 %v320
        %v365 = vunpack.c.h.b16 %v320
        %v366 = vunpack.c.l.b16 %v321
        %v367 = vunpack.c.h.b16 %v321
        %v368 = vunpack.c.l.b16 %v322
        %v369 = vunpack.c.h.b16 %v322
        %v370 = vunpack.c.l.b16 %v323
        %v371 = vunpack.c.h.b16 %v323
        %v372 = vpack.c.b16 %v342, %v340
        %v373 = vpack.c.b16 %v343, %v341
        %v374 = vpack.c.b16 %v346, %v344
        %v375 = vpack.c.b16 %v347, %v345
        %v376 = vpack.c.b16 %v350, %v348
        %v377 = vpack.c.b16 %v351, %v349
        %v378 = vpack.c.b16 %v354, %v352
        %v379 = vpack.c.b16 %v355, %v353
        %v380 = vpack.c.b16 %v358, %v356
        %v381 = vpack.c.b16 %v359, %v357
        %v382 = vpack.c.b16 %v362, %v360
        %v383 = vpack.c.b16 %v363, %v361
        %v384 = vpack.c.b16 %v366, %v364
        %v385 = vpack.c.b16 %v367, %v365
        %v386 = vpack.c.b16 %v370, %v368
        %v387 = vpack.c.b16 %v371, %v369
        %404 = vmatprep.subr.bf16.mxu0 %v373
        %405 = vmatpush1.bf16.msra.mxu0 %v372
        %406 = vmatprep.subr.bf16.mxu0 %v375
        %407 = vmatpush1.bf16.msra.mxu0 %v374
        %408 = vmatprep.subr.bf16.mxu0 %v377
        %409 = vmatpush1.bf16.msra.mxu0 %v376
        %410 = vmatprep.subr.bf16.mxu0 %v379
        %411 = vmatpush1.bf16.msra.mxu0 %v378
        %412 = vmatprep.subr.bf16.mxu0 %v381
        %413 = vmatpush1.bf16.msra.mxu0 %v380
        %414 = vmatprep.subr.bf16.mxu0 %v383
        %415 = vmatpush1.bf16.msra.mxu0 %v382
        %416 = vmatprep.subr.bf16.mxu0 %v385
        %417 = vmatpush1.bf16.msra.mxu0 %v384
        %418 = vmatprep.subr.bf16.mxu0 %v387
        %419 = vmatpush1.bf16.msra.mxu0 %v386
        %420 = vmatprep.subr.bf16.mxu0 0
        %421 = vmatpush1.bf16.msra.mxu0 0
        %422 = vmatprep.subr.bf16.mxu0 0
        %423 = vmatpush1.bf16.msra.mxu0 0
        %424 = vmatprep.subr.bf16.mxu0 0
        %425 = vmatpush1.bf16.msra.mxu0 0
        %426 = vmatprep.subr.bf16.mxu0 0
        %427 = vmatpush1.bf16.msra.mxu0 0
        %428 = vmatprep.subr.bf16.mxu0 0
        %429 = vmatpush1.bf16.msra.mxu0 0
        %430 = vmatprep.subr.bf16.mxu0 0
        %431 = vmatpush1.bf16.msra.mxu0 0
        %432 = vmatprep.subr.bf16.mxu0 0
        %433 = vmatpush1.bf16.msra.mxu0 0
        %434 = vmatprep.subr.bf16.mxu0 0
        %435 = vmatpush1.bf16.msra.mxu0 0
        %436 = vmatprep.mubr.bf16.mxu0 0
        %437 = vmatmul.mubr.bf16.gmra.mrb[0].mxu0 %v292
        %v438 = vpop.f32.mrb[0].mxu0
        %v439 = vadd.f32 0.0, %v438
        %v440 = vpop.f32.mrb[0].mxu0
        %v441 = vadd.f32 0.0, %v440
        %v442 = vpop.f32.mrb[0].mxu0
        %v443 = vadd.f32 0.0, %v442
        %v444 = vpop.f32.mrb[0].mxu0
        %v445 = vadd.f32 0.0, %v444
        %446 = vmatprep.mubr.bf16.mxu0 0
        %447 = vmatmul.mubr.bf16.gmra.mrb[0].mxu0 %v293
        %v448 = vpop.f32.mrb[0].mxu0
        %v449 = vadd.f32 0.0, %v448
        %v450 = vpop.f32.mrb[0].mxu0
        %v451 = vadd.f32 0.0, %v450
        %v452 = vpop.f32.mrb[0].mxu0
        %v453 = vadd.f32 0.0, %v452
        %v454 = vpop.f32.mrb[0].mxu0
        %v455 = vadd.f32 0.0, %v454
        %456 = vmatprep.mubr.bf16.mxu0 0
        %457 = vmatmul.mubr.bf16.gmra.mrb[0].mxu0 %v294
        %v458 = vpop.f32.mrb[0].mxu0
        %v459 = vadd.f32 0.0, %v458
        %v460 = vpop.f32.mrb[0].mxu0
        %v461 = vadd.f32 0.0, %v460
        %v462 = vpop.f32.mrb[0].mxu0
        %v463 = vadd.f32 0.0, %v462
        %v464 = vpop.f32.mrb[0].mxu0
        %v465 = vadd.f32 0.0, %v464
        %466 = vmatprep.mubr.bf16.mxu0 0
        %467 = vmatmul.mubr.bf16.gmra.mrb[0].mxu0 %v295
        %v468 = vpop.f32.mrb[0].mxu0
        %v469 = vadd.f32 0.0, %v468
        %v470 = vpop.f32.mrb[0].mxu0
        %v471 = vadd.f32 0.0, %v470
        %v472 = vpop.f32.mrb[0].mxu0
        %v473 = vadd.f32 0.0, %v472
        %v474 = vpop.f32.mrb[0].mxu0
        %v475 = vadd.f32 0.0, %v474
        %476 = vmatprep.mubr.bf16.mxu0 0
        %477 = vmatmul.mubr.bf16.gmra.mrb[0].mxu0 %v296
        %v478 = vpop.f32.mrb[0].mxu0
        %v479 = vadd.f32 0.0, %v478
        %v480 = vpop.f32.mrb[0].mxu0
        %v481 = vadd.f32 0.0, %v480
        %v482 = vpop.f32.mrb[0].mxu0
        %v483 = vadd.f32 0.0, %v482
        %v484 = vpop.f32.mrb[0].mxu0
        %v485 = vadd.f32 0.0, %v484
        %486 = vmatprep.mubr.bf16.mxu0 0
        %487 = vmatmul.mubr.bf16.gmra.mrb[0].mxu0 %v297
        %v488 = vpop.f32.mrb[0].mxu0
        %v489 = vadd.f32 0.0, %v488
        %v490 = vpop.f32.mrb[0].mxu0
        %v491 = vadd.f32 0.0, %v490
        %v492 = vpop.f32.mrb[0].mxu0
        %v493 = vadd.f32 0.0, %v492
        %v494 = vpop.f32.mrb[0].mxu0
        %v495 = vadd.f32 0.0, %v494
        %496 = vmatprep.mubr.bf16.mxu0 0
        %497 = vmatmul.mubr.bf16.gmra.mrb[0].mxu0 %v298
        %v498 = vpop.f32.mrb[0].mxu0
        %v499 = vadd.f32 0.0, %v498
        %v500 = vpop.f32.mrb[0].mxu0
        %v501 = vadd.f32 0.0, %v500
        %v502 = vpop.f32.mrb[0].mxu0
        %v503 = vadd.f32 0.0, %v502
        %v504 = vpop.f32.mrb[0].mxu0
        %v505 = vadd.f32 0.0, %v504
        %506 = vmatprep.mubr.bf16.mxu0 0
        %507 = vmatmul.mubr.bf16.gmra.mrb[0].mxu0 %v299
        %v508 = vpop.f32.mrb[0].mxu0
        %v509 = vadd.f32 0.0, %v508
        %v510 = vpop.f32.mrb[0].mxu0
        %v511 = vadd.f32 0.0, %v510
        %v512 = vpop.f32.mrb[0].mxu0
        %v513 = vadd.f32 0.0, %v512
        %v514 = vpop.f32.mrb[0].mxu0
        %v515 = vadd.f32 0.0, %v514
        %516 = vmatprep.mubr.bf16.mxu0 0
        %517 = vmatmul.mubr.bf16.gmra.mrb[0].mxu0 %v300
        %v518 = vpop.f32.mrb[0].mxu0
        %v519 = vadd.f32 0.0, %v518
        %v520 = vpop.f32.mrb[0].mxu0
        %v521 = vadd.f32 0.0, %v520
        %v522 = vpop.f32.mrb[0].mxu0
        %v523 = vadd.f32 0.0, %v522
        %v524 = vpop.f32.mrb[0].mxu0
        %v525 = vadd.f32 0.0, %v524
        %526 = vmatprep.mubr.bf16.mxu0 0
        %527 = vmatmul.mubr.bf16.gmra.mrb[0].mxu0 %v301
        %v528 = vpop.f32.mrb[0].mxu0
        %v529 = vadd.f32 0.0, %v528
        %v530 = vpop.f32.mrb[0].mxu0
        %v531 = vadd.f32 0.0, %v530
        %v532 = vpop.f32.mrb[0].mxu0
        %v533 = vadd.f32 0.0, %v532
        %v534 = vpop.f32.mrb[0].mxu0
        %v535 = vadd.f32 0.0, %v534
        %536 = vmatprep.mubr.bf16.mxu0 0
        %537 = vmatmul.mubr.bf16.gmra.mrb[0].mxu0 %v302
        %v538 = vpop.f32.mrb[0].mxu0
        %v539 = vadd.f32 0.0, %v538
        %v540 = vpop.f32.mrb[0].mxu0
        %v541 = vadd.f32 0.0, %v540
        %v542 = vpop.f32.mrb[0].mxu0
        %v543 = vadd.f32 0.0, %v542
        %v544 = vpop.f32.mrb[0].mxu0
        %v545 = vadd.f32 0.0, %v544
        %546 = vmatprep.mubr.bf16.mxu0 0
        %547 = vmatmul.mubr.bf16.gmra.mrb[0].mxu0 %v303
        %v548 = vpop.f32.mrb[0].mxu0
        %v549 = vadd.f32 0.0, %v548
        %v550 = vpop.f32.mrb[0].mxu0
        %v551 = vadd.f32 0.0, %v550
        %v552 = vpop.f32.mrb[0].mxu0
        %v553 = vadd.f32 0.0, %v552
        %v554 = vpop.f32.mrb[0].mxu0
        %v555 = vadd.f32 0.0, %v554
        %556 = vmatprep.mubr.bf16.mxu0 0
        %557 = vmatmul.mubr.bf16.gmra.mrb[0].mxu0 %v304
        %v558 = vpop.f32.mrb[0].mxu0
        %v559 = vadd.f32 0.0, %v558
        %v560 = vpop.f32.mrb[0].mxu0
        %v561 = vadd.f32 0.0, %v560
        %v562 = vpop.f32.mrb[0].mxu0
        %v563 = vadd.f32 0.0, %v562
        %v564 = vpop.f32.mrb[0].mxu0
        %v565 = vadd.f32 0.0, %v564
        %566 = vmatprep.mubr.bf16.mxu0 0
        %567 = vmatmul.mubr.bf16.gmra.mrb[0].mxu0 %v305
        %v568 = vpop.f32.mrb[0].mxu0
        %v569 = vadd.f32 0.0, %v568
        %v570 = vpop.f32.mrb[0].mxu0
        %v571 = vadd.f32 0.0, %v570
        %v572 = vpop.f32.mrb[0].mxu0
        %v573 = vadd.f32 0.0, %v572
        %v574 = vpop.f32.mrb[0].mxu0
        %v575 = vadd.f32 0.0, %v574
        %576 = vmatprep.mubr.bf16.mxu0 0
        %577 = vmatmul.mubr.bf16.gmra.mrb[0].mxu0 %v306
        %v578 = vpop.f32.mrb[0].mxu0
        %v579 = vadd.f32 0.0, %v578
        %v580 = vpop.f32.mrb[0].mxu0
        %v581 = vadd.f32 0.0, %v580
        %v582 = vpop.f32.mrb[0].mxu0
        %v583 = vadd.f32 0.0, %v582
        %v584 = vpop.f32.mrb[0].mxu0
        %v585 = vadd.f32 0.0, %v584
        %586 = vmatprep.mubr.bf16.mxu0 0
        %587 = vmatmul.mubr.bf16.gmra.mrb[0].mxu0 %v307
        %v588 = vpop.f32.mrb[0].mxu0
        %v589 = vadd.f32 0.0, %v588
        %v590 = vpop.f32.mrb[0].mxu0
        %v591 = vadd.f32 0.0, %v590
        %v592 = vpop.f32.mrb[0].mxu0
        %v593 = vadd.f32 0.0, %v592
        %v594 = vpop.f32.mrb[0].mxu0
        %v595 = vadd.f32 0.0, %v594
        %596 = vdwg.mxu0
        %v597 = vpack.c.bf16 %v443, %v439
        %v598 = vpack.c.bf16 %v445, %v441
        %v599 = vpack.c.bf16 %v453, %v449
        %v600 = vpack.c.bf16 %v455, %v451
        %v601 = vpack.c.bf16 %v463, %v459
        %v602 = vpack.c.bf16 %v465, %v461
        %v603 = vpack.c.bf16 %v473, %v469
        %v604 = vpack.c.bf16 %v475, %v471
        %v605 = vpack.c.bf16 %v483, %v479
        %v606 = vpack.c.bf16 %v485, %v481
        %v607 = vpack.c.bf16 %v493, %v489
        %v608 = vpack.c.bf16 %v495, %v491
        %v609 = vpack.c.bf16 %v503, %v499
        %v610 = vpack.c.bf16 %v505, %v501
        %v611 = vpack.c.bf16 %v513, %v509
        %v612 = vpack.c.bf16 %v515, %v511
        %v613 = vpack.c.bf16 %v523, %v519
        %v614 = vpack.c.bf16 %v525, %v521
        %v615 = vpack.c.bf16 %v533, %v529
        %v616 = vpack.c.bf16 %v535, %v531
        %v617 = vpack.c.bf16 %v543, %v539
        %v618 = vpack.c.bf16 %v545, %v541
        %v619 = vpack.c.bf16 %v553, %v549
        %v620 = vpack.c.bf16 %v555, %v551
        %v621 = vpack.c.bf16 %v563, %v559
        %v622 = vpack.c.bf16 %v565, %v561
        %v623 = vpack.c.bf16 %v573, %v569
        %v624 = vpack.c.bf16 %v575, %v571
        %v625 = vpack.c.bf16 %v583, %v579
        %v626 = vpack.c.bf16 %v585, %v581
        %v627 = vpack.c.bf16 %v593, %v589
        %v628 = vpack.c.bf16 %v595, %v591
        %v661 = vunpack.c.l.b16 %v597
        %v662 = vunpack.c.l.b16 %v598
        %v663 = vunpack.c.h.b16 %v597
        %v664 = vunpack.c.h.b16 %v598
        %v665 = vunpack.c.l.b16 %v599
        %v666 = vunpack.c.l.b16 %v600
        %v667 = vunpack.c.h.b16 %v599
        %v668 = vunpack.c.h.b16 %v600
        %v669 = vunpack.c.l.b16 %v601
        %v670 = vunpack.c.l.b16 %v602
        %v671 = vunpack.c.h.b16 %v601
        %v672 = vunpack.c.h.b16 %v602
        %v673 = vunpack.c.l.b16 %v603
        %v674 = vunpack.c.l.b16 %v604
        %v675 = vunpack.c.h.b16 %v603
        %v676 = vunpack.c.h.b16 %v604
        %v677 = vunpack.c.l.b16 %v605
        %v678 = vunpack.c.l.b16 %v606
        %v679 = vunpack.c.h.b16 %v605
        %v680 = vunpack.c.h.b16 %v606
        %v681 = vunpack.c.l.b16 %v607
        %v682 = vunpack.c.l.b16 %v608
        %v683 = vunpack.c.h.b16 %v607
        %v684 = vunpack.c.h.b16 %v608
        %v685 = vunpack.c.l.b16 %v609
        %v686 = vunpack.c.l.b16 %v610
        %v687 = vunpack.c.h.b16 %v609
        %v688 = vunpack.c.h.b16 %v610
        %v689 = vunpack.c.l.b16 %v611
        %v690 = vunpack.c.l.b16 %v612
        %v691 = vunpack.c.h.b16 %v611
        %v692 = vunpack.c.h.b16 %v612
        %v693 = vunpack.c.l.b16 %v613
        %v694 = vunpack.c.l.b16 %v614
        %v695 = vunpack.c.h.b16 %v613
        %v696 = vunpack.c.h.b16 %v614
        %v697 = vunpack.c.l.b16 %v615
        %v698 = vunpack.c.l.b16 %v616
        %v699 = vunpack.c.h.b16 %v615
        %v700 = vunpack.c.h.b16 %v616
        %v701 = vunpack.c.l.b16 %v617
        %v702 = vunpack.c.l.b16 %v618
        %v703 = vunpack.c.h.b16 %v617
        %v704 = vunpack.c.h.b16 %v618
        %v705 = vunpack.c.l.b16 %v619
        %v706 = vunpack.c.l.b16 %v620
        %v707 = vunpack.c.h.b16 %v619
        %v708 = vunpack.c.h.b16 %v620
        %v709 = vunpack.c.l.b16 %v621
        %v710 = vunpack.c.l.b16 %v622
        %v711 = vunpack.c.h.b16 %v621
        %v712 = vunpack.c.h.b16 %v622
        %v713 = vunpack.c.l.b16 %v623
        %v714 = vunpack.c.l.b16 %v624
        %v715 = vunpack.c.h.b16 %v623
        %v716 = vunpack.c.h.b16 %v624
        %v717 = vunpack.c.l.b16 %v625
        %v718 = vunpack.c.l.b16 %v626
        %v719 = vunpack.c.h.b16 %v625
        %v720 = vunpack.c.h.b16 %v626
        %v721 = vunpack.c.l.b16 %v627
        %v722 = vunpack.c.l.b16 %v628
        %v723 = vunpack.c.h.b16 %v627
        %v724 = vunpack.c.h.b16 %v628
        %v725 = vpack.c.b16 %v662, %v661
        %v726 = vpack.c.b16 %v664, %v663
        %v727 = vpack.c.b16 %v666, %v665
        %v728 = vpack.c.b16 %v668, %v667
        %v729 = vpack.c.b16 %v670, %v669
        %v730 = vpack.c.b16 %v672, %v671
        %v731 = vpack.c.b16 %v674, %v673
        %v732 = vpack.c.b16 %v676, %v675
        %v733 = vpack.c.b16 %v678, %v677
        %v734 = vpack.c.b16 %v680, %v679
        %v735 = vpack.c.b16 %v682, %v681
        %v736 = vpack.c.b16 %v684, %v683
        %v737 = vpack.c.b16 %v686, %v685
        %v738 = vpack.c.b16 %v688, %v687
        %v739 = vpack.c.b16 %v690, %v689
        %v740 = vpack.c.b16 %v692, %v691
        %v741 = vpack.c.b16 %v694, %v693
        %v742 = vpack.c.b16 %v696, %v695
        %v743 = vpack.c.b16 %v698, %v697
        %v744 = vpack.c.b16 %v700, %v699
        %v745 = vpack.c.b16 %v702, %v701
        %v746 = vpack.c.b16 %v704, %v703
        %v747 = vpack.c.b16 %v706, %v705
        %v748 = vpack.c.b16 %v708, %v707
        %v749 = vpack.c.b16 %v710, %v709
        %v750 = vpack.c.b16 %v712, %v711
        %v751 = vpack.c.b16 %v714, %v713
        %v752 = vpack.c.b16 %v716, %v715
        %v753 = vpack.c.b16 %v718, %v717
        %v754 = vpack.c.b16 %v720, %v719
        %v755 = vpack.c.b16 %v722, %v721
        %v756 = vpack.c.b16 %v724, %v723
        %789 = vst [vmem:[%s255] sm:$0xff] %v725
        %790 = vst [vmem:[%s255 + $0x8] sm:$0xff] %v726
        %791 = vst [vmem:[%s255 + $0x10] sm:$0xff] %v727
        %792 = vst [vmem:[%s255 + $0x18] sm:$0xff] %v728
        %793 = vst [vmem:[%s255 + $0x20] sm:$0xff] %v729
        %794 = vst [vmem:[%s255 + $0x28] sm:$0xff] %v730
        %795 = vst [vmem:[%s255 + $0x30] sm:$0xff] %v731
        %796 = vst [vmem:[%s255 + $0x38] sm:$0xff] %v732
        %797 = vst [vmem:[%s255 + $0x40] sm:$0xff] %v733
        %798 = vst [vmem:[%s255 + $0x48] sm:$0xff] %v734
        %799 = vst [vmem:[%s255 + $0x50] sm:$0xff] %v735
        %800 = vst [vmem:[%s255 + $0x58] sm:$0xff] %v736
        %801 = vst [vmem:[%s255 + $0x60] sm:$0xff] %v737
        %802 = vst [vmem:[%s255 + $0x68] sm:$0xff] %v738
        %803 = vst [vmem:[%s255 + $0x70] sm:$0xff] %v739
        %804 = vst [vmem:[%s255 + $0x78] sm:$0xff] %v740
        %805 = vst [vmem:[%s255 + $0x80] sm:$0xff] %v741
        %806 = vst [vmem:[%s255 + $0x88] sm:$0xff] %v742
        %807 = vst [vmem:[%s255 + $0x90] sm:$0xff] %v743
        %808 = vst [vmem:[%s255 + $0x98] sm:$0xff] %v744
        %809 = vst [vmem:[%s255 + $0xa0] sm:$0xff] %v745
        %810 = vst [vmem:[%s255 + $0xa8] sm:$0xff] %v746
        %811 = vst [vmem:[%s255 + $0xb0] sm:$0xff] %v747
        %812 = vst [vmem:[%s255 + $0xb8] sm:$0xff] %v748
        %813 = vst [vmem:[%s255 + $0xc0] sm:$0xff] %v749
        %814 = vst [vmem:[%s255 + $0xc8] sm:$0xff] %v750
        %815 = vst [vmem:[%s255 + $0xd0] sm:$0xff] %v751
        %816 = vst [vmem:[%s255 + $0xd8] sm:$0xff] %v752
        %817 = vst [vmem:[%s255 + $0xe0] sm:$0xff] %v753
        %818 = vst [vmem:[%s255 + $0xe8] sm:$0xff] %v754
        %819 = vst [vmem:[%s255 + $0xf0] sm:$0xff] %v755
        %820 = vst [vmem:[%s255 + $0xf8] sm:$0xff] %v756
        %v821 = vld [vmem:[#allocation7] sm:$0xf]
        %v822 = vld [vmem:[#allocation7 + $0x4] sm:$0xf]
        %v823 = vld [vmem:[#allocation7 + $0x8] sm:$0xf]
        %v824 = vld [vmem:[#allocation7 + $0xc] sm:$0xf]
        %v825 = vld [vmem:[#allocation7 + $0x10] sm:$0xf]
        %v826 = vld [vmem:[#allocation7 + $0x14] sm:$0xf]
        %v827 = vld [vmem:[#allocation7 + $0x18] sm:$0xf]
        %v828 = vld [vmem:[#allocation7 + $0x1c] sm:$0xf]
        %v829 = vld [vmem:[#allocation7 + $0x20] sm:$0xf]
        %v830 = vld [vmem:[#allocation7 + $0x24] sm:$0xf]
        %v831 = vld [vmem:[#allocation7 + $0x28] sm:$0xf]
        %v832 = vld [vmem:[#allocation7 + $0x2c] sm:$0xf]
        %v833 = vld [vmem:[#allocation7 + $0x30] sm:$0xf]
        %v834 = vld [vmem:[#allocation7 + $0x34] sm:$0xf]
        %v835 = vld [vmem:[#allocation7 + $0x38] sm:$0xf]
        %v836 = vld [vmem:[#allocation7 + $0x3c] sm:$0xf]
        %v837 = vld [vmem:[#allocation7 + $0x40] sm:$0xf]
        %v838 = vld [vmem:[#allocation7 + $0x44] sm:$0xf]
        %v839 = vld [vmem:[#allocation7 + $0x48] sm:$0xf]
        %v840 = vld [vmem:[#allocation7 + $0x4c] sm:$0xf]
        %v841 = vld [vmem:[#allocation7 + $0x50] sm:$0xf]
        %v842 = vld [vmem:[#allocation7 + $0x54] sm:$0xf]
        %v843 = vld [vmem:[#allocation7 + $0x58] sm:$0xf]
        %v844 = vld [vmem:[#allocation7 + $0x5c] sm:$0xf]
        %v845 = vld [vmem:[#allocation7 + $0x60] sm:$0xf]
        %v846 = vld [vmem:[#allocation7 + $0x64] sm:$0xf]
        %v847 = vld [vmem:[#allocation7 + $0x68] sm:$0xf]
        %v848 = vld [vmem:[#allocation7 + $0x6c] sm:$0xf]
        %v849 = vld [vmem:[#allocation7 + $0x70] sm:$0xf]
        %v850 = vld [vmem:[#allocation7 + $0x74] sm:$0xf]
        %v851 = vld [vmem:[#allocation7 + $0x78] sm:$0xf]
        %v852 = vld [vmem:[#allocation7 + $0x7c] sm:$0xf]
        %v885 = vunpack.c.l.b16 %v821
        %v886 = vunpack.c.l.b16 %v822
        %v887 = vunpack.c.l.b16 %v823
        %v888 = vunpack.c.l.b16 %v824
        %v889 = vunpack.c.l.b16 %v825
        %v890 = vunpack.c.l.b16 %v826
        %v891 = vunpack.c.l.b16 %v827
        %v892 = vunpack.c.l.b16 %v828
        %v893 = vunpack.c.l.b16 %v829
        %v894 = vunpack.c.l.b16 %v830
        %v895 = vunpack.c.l.b16 %v831
        %v896 = vunpack.c.l.b16 %v832
        %v897 = vunpack.c.l.b16 %v833
        %v898 = vunpack.c.l.b16 %v834
        %v899 = vunpack.c.l.b16 %v835
        %v900 = vunpack.c.l.b16 %v836
        %v901 = vunpack.c.l.b16 %v837
        %v902 = vunpack.c.l.b16 %v838
        %v903 = vunpack.c.l.b16 %v839
        %v904 = vunpack.c.l.b16 %v840
        %v905 = vunpack.c.l.b16 %v841
        %v906 = vunpack.c.l.b16 %v842
        %v907 = vunpack.c.l.b16 %v843
        %v908 = vunpack.c.l.b16 %v844
        %v909 = vunpack.c.l.b16 %v845
        %v910 = vunpack.c.l.b16 %v846
        %v911 = vunpack.c.l.b16 %v847
        %v912 = vunpack.c.l.b16 %v848
        %v913 = vunpack.c.l.b16 %v849
        %v914 = vunpack.c.l.b16 %v850
        %v915 = vunpack.c.l.b16 %v851
        %v916 = vunpack.c.l.b16 %v852
        %v917 = vpack.c.b16 %v886, %v885
        %v918 = vpack.c.b16 %v888, %v887
        %v919 = vpack.c.b16 %v890, %v889
        %v920 = vpack.c.b16 %v892, %v891
        %v921 = vpack.c.b16 %v894, %v893
        %v922 = vpack.c.b16 %v896, %v895
        %v923 = vpack.c.b16 %v898, %v897
        %v924 = vpack.c.b16 %v900, %v899
        %v925 = vpack.c.b16 %v902, %v901
        %v926 = vpack.c.b16 %v904, %v903
        %v927 = vpack.c.b16 %v906, %v905
        %v928 = vpack.c.b16 %v908, %v907
        %v929 = vpack.c.b16 %v910, %v909
        %v930 = vpack.c.b16 %v912, %v911
        %v931 = vpack.c.b16 %v914, %v913
        %v932 = vpack.c.b16 %v916, %v915
        %949 = vmatprep.subr.bf16.mxu0 0
        %950 = vmatpush1.bf16.msra.mxu0 %v917
        %951 = vmatprep.subr.bf16.mxu0 0
        %952 = vmatpush1.bf16.msra.mxu0 %v918
        %953 = vmatprep.subr.bf16.mxu0 0
        %954 = vmatpush1.bf16.msra.mxu0 %v919
        %955 = vmatprep.subr.bf16.mxu0 0
        %956 = vmatpush1.bf16.msra.mxu0 %v920
        %957 = vmatprep.subr.bf16.mxu0 0
        %958 = vmatpush1.bf16.msra.mxu0 %v921
        %959 = vmatprep.subr.bf16.mxu0 0
        %960 = vmatpush1.bf16.msra.mxu0 %v922
        %961 = vmatprep.subr.bf16.mxu0 0
        %962 = vmatpush1.bf16.msra.mxu0 %v923
        %963 = vmatprep.subr.bf16.mxu0 0
        %964 = vmatpush1.bf16.msra.mxu0 %v924
        %965 = vmatprep.subr.bf16.mxu0 0
        %966 = vmatpush1.bf16.msra.mxu0 %v925
        %967 = vmatprep.subr.bf16.mxu0 0
        %968 = vmatpush1.bf16.msra.mxu0 %v926
        %969 = vmatprep.subr.bf16.mxu0 0
        %970 = vmatpush1.bf16.msra.mxu0 %v927
        %971 = vmatprep.subr.bf16.mxu0 0
        %972 = vmatpush1.bf16.msra.mxu0 %v928
        %973 = vmatprep.subr.bf16.mxu0 0
        %974 = vmatpush1.bf16.msra.mxu0 %v929
        %975 = vmatprep.subr.bf16.mxu0 0
        %976 = vmatpush1.bf16.msra.mxu0 %v930
        %977 = vmatprep.subr.bf16.mxu0 0
        %978 = vmatpush1.bf16.msra.mxu0 %v931
        %979 = vmatprep.subr.bf16.mxu0 0
        %980 = vmatpush1.bf16.msra.mxu0 %v932
        %981 = vmatprep.mubr.bf16.mxu0 %v598
        %982 = vmatmul.mubr.bf16.gmra.mrb[0].mxu0 %v597
        %v983 = vpop.f32.mrb[0].mxu0
        %v984 = vadd.f32 0.0, %v983
        %v985 = vpop.f32.mrb[0].mxu0
        %v986 = vpop.f32.mrb[0].mxu0
        %v987 = vadd.f32 0.0, %v986
        %v988 = vpop.f32.mrb[0].mxu0
        %989 = vmatprep.mubr.bf16.mxu0 %v600
        %990 = vmatmul.mubr.bf16.gmra.mrb[0].mxu0 %v599
        %v991 = vpop.f32.mrb[0].mxu0
        %v992 = vadd.f32 0.0, %v991
        %v993 = vpop.f32.mrb[0].mxu0
        %v994 = vpop.f32.mrb[0].mxu0
        %v995 = vadd.f32 0.0, %v994
        %v996 = vpop.f32.mrb[0].mxu0
        %997 = vmatprep.mubr.bf16.mxu0 %v602
        %998 = vmatmul.mubr.bf16.gmra.mrb[0].mxu0 %v601
        %v999 = vpop.f32.mrb[0].mxu0
        %v1000 = vadd.f32 0.0, %v999
        %v1001 = vpop.f32.mrb[0].mxu0
        %v1002 = vpop.f32.mrb[0].mxu0
        %v1003 = vadd.f32 0.0, %v1002
        %v1004 = vpop.f32.mrb[0].mxu0
        %1005 = vmatprep.mubr.bf16.mxu0 %v604
        %1006 = vmatmul.mubr.bf16.gmra.mrb[0].mxu0 %v603
        %v1007 = vpop.f32.mrb[0].mxu0
        %v1008 = vadd.f32 0.0, %v1007
        %v1009 = vpop.f32.mrb[0].mxu0
        %v1010 = vpop.f32.mrb[0].mxu0
        %v1011 = vadd.f32 0.0, %v1010
        %v1012 = vpop.f32.mrb[0].mxu0
        %1013 = vmatprep.mubr.bf16.mxu0 %v606
        %1014 = vmatmul.mubr.bf16.gmra.mrb[0].mxu0 %v605
        %v1015 = vpop.f32.mrb[0].mxu0
        %v1016 = vadd.f32 0.0, %v1015
        %v1017 = vpop.f32.mrb[0].mxu0
        %v1018 = vpop.f32.mrb[0].mxu0
        %v1019 = vadd.f32 0.0, %v1018
        %v1020 = vpop.f32.mrb[0].mxu0
        %1021 = vmatprep.mubr.bf16.mxu0 %v608
        %1022 = vmatmul.mubr.bf16.gmra.mrb[0].mxu0 %v607
        %v1023 = vpop.f32.mrb[0].mxu0
        %v1024 = vadd.f32 0.0, %v1023
        %v1025 = vpop.f32.mrb[0].mxu0
        %v1026 = vpop.f32.mrb[0].mxu0
        %v1027 = vadd.f32 0.0, %v1026
        %v1028 = vpop.f32.mrb[0].mxu0
        %1029 = vmatprep.mubr.bf16.mxu0 %v610
        %1030 = vmatmul.mubr.bf16.gmra.mrb[0].mxu0 %v609
        %v1031 = vpop.f32.mrb[0].mxu0
        %v1032 = vadd.f32 0.0, %v1031
        %v1033 = vpop.f32.mrb[0].mxu0
        %v1034 = vpop.f32.mrb[0].mxu0
        %v1035 = vadd.f32 0.0, %v1034
        %v1036 = vpop.f32.mrb[0].mxu0
        %1037 = vmatprep.mubr.bf16.mxu0 %v612
        %1038 = vmatmul.mubr.bf16.gmra.mrb[0].mxu0 %v611
        %v1039 = vpop.f32.mrb[0].mxu0
        %v1040 = vadd.f32 0.0, %v1039
        %v1041 = vpop.f32.mrb[0].mxu0
        %v1042 = vpop.f32.mrb[0].mxu0
        %v1043 = vadd.f32 0.0, %v1042
        %v1044 = vpop.f32.mrb[0].mxu0
        %1045 = vmatprep.mubr.bf16.mxu0 %v614
        %1046 = vmatmul.mubr.bf16.gmra.mrb[0].mxu0 %v613
        %v1047 = vpop.f32.mrb[0].mxu0
        %v1048 = vadd.f32 0.0, %v1047
        %v1049 = vpop.f32.mrb[0].mxu0
        %v1050 = vpop.f32.mrb[0].mxu0
        %v1051 = vadd.f32 0.0, %v1050
        %v1052 = vpop.f32.mrb[0].mxu0
        %1053 = vmatprep.mubr.bf16.mxu0 %v616
        %1054 = vmatmul.mubr.bf16.gmra.mrb[0].mxu0 %v615
        %v1055 = vpop.f32.mrb[0].mxu0
        %v1056 = vadd.f32 0.0, %v1055
        %v1057 = vpop.f32.mrb[0].mxu0
        %v1058 = vpop.f32.mrb[0].mxu0
        %v1059 = vadd.f32 0.0, %v1058
        %v1060 = vpop.f32.mrb[0].mxu0
        %1061 = vmatprep.mubr.bf16.mxu0 %v618
        %1062 = vmatmul.mubr.bf16.gmra.mrb[0].mxu0 %v617
        %v1063 = vpop.f32.mrb[0].mxu0
        %v1064 = vadd.f32 0.0, %v1063
        %v1065 = vpop.f32.mrb[0].mxu0
        %v1066 = vpop.f32.mrb[0].mxu0
        %v1067 = vadd.f32 0.0, %v1066
        %v1068 = vpop.f32.mrb[0].mxu0
        %1069 = vmatprep.mubr.bf16.mxu0 %v620
        %1070 = vmatmul.mubr.bf16.gmra.mrb[0].mxu0 %v619
        %v1071 = vpop.f32.mrb[0].mxu0
        %v1072 = vadd.f32 0.0, %v1071
        %v1073 = vpop.f32.mrb[0].mxu0
        %v1074 = vpop.f32.mrb[0].mxu0
        %v1075 = vadd.f32 0.0, %v1074
        %v1076 = vpop.f32.mrb[0].mxu0
        %1077 = vmatprep.mubr.bf16.mxu0 %v622
        %1078 = vmatmul.mubr.bf16.gmra.mrb[0].mxu0 %v621
        %v1079 = vpop.f32.mrb[0].mxu0
        %v1080 = vadd.f32 0.0, %v1079
        %v1081 = vpop.f32.mrb[0].mxu0
        %v1082 = vpop.f32.mrb[0].mxu0
        %v1083 = vadd.f32 0.0, %v1082
        %v1084 = vpop.f32.mrb[0].mxu0
        %1085 = vmatprep.mubr.bf16.mxu0 %v624
        %1086 = vmatmul.mubr.bf16.gmra.mrb[0].mxu0 %v623
        %v1087 = vpop.f32.mrb[0].mxu0
        %v1088 = vadd.f32 0.0, %v1087
        %v1089 = vpop.f32.mrb[0].mxu0
        %v1090 = vpop.f32.mrb[0].mxu0
        %v1091 = vadd.f32 0.0, %v1090
        %v1092 = vpop.f32.mrb[0].mxu0
        %1093 = vmatprep.mubr.bf16.mxu0 %v626
        %1094 = vmatmul.mubr.bf16.gmra.mrb[0].mxu0 %v625
        %v1095 = vpop.f32.mrb[0].mxu0
        %v1096 = vadd.f32 0.0, %v1095
        %v1097 = vpop.f32.mrb[0].mxu0
        %v1098 = vpop.f32.mrb[0].mxu0
        %v1099 = vadd.f32 0.0, %v1098
        %v1100 = vpop.f32.mrb[0].mxu0
        %1101 = vmatprep.mubr.bf16.mxu0 %v628
        %1102 = vmatmul.mubr.bf16.gmra.mrb[0].mxu0 %v627
        %v1103 = vpop.f32.mrb[0].mxu0
        %v1104 = vadd.f32 0.0, %v1103
        %v1105 = vpop.f32.mrb[0].mxu0
        %v1106 = vpop.f32.mrb[0].mxu0
        %v1107 = vadd.f32 0.0, %v1106
        %v1108 = vpop.f32.mrb[0].mxu0
        %1109 = vdwg.mxu0
        %v1110 = vpack.c.bf16 %v987, %v984
        %v1111 = vpack.c.bf16 %v995, %v992
        %v1112 = vpack.c.bf16 %v1003, %v1000
        %v1113 = vpack.c.bf16 %v1011, %v1008
        %v1114 = vpack.c.bf16 %v1019, %v1016
        %v1115 = vpack.c.bf16 %v1027, %v1024
        %v1116 = vpack.c.bf16 %v1035, %v1032
        %v1117 = vpack.c.bf16 %v1043, %v1040
        %v1118 = vpack.c.bf16 %v1051, %v1048
        %v1119 = vpack.c.bf16 %v1059, %v1056
        %v1120 = vpack.c.bf16 %v1067, %v1064
        %v1121 = vpack.c.bf16 %v1075, %v1072
        %v1122 = vpack.c.bf16 %v1083, %v1080
        %v1123 = vpack.c.bf16 %v1091, %v1088
        %v1124 = vpack.c.bf16 %v1099, %v1096
        %v1125 = vpack.c.bf16 %v1107, %v1104
        %v1142 = vunpack.c.l.b16 %v1110
        %v1143 = vunpack.c.h.b16 %v1110
        %v1144 = vunpack.c.l.b16 %v1111
        %v1145 = vunpack.c.h.b16 %v1111
        %v1146 = vunpack.c.l.b16 %v1112
        %v1147 = vunpack.c.h.b16 %v1112
        %v1148 = vunpack.c.l.b16 %v1113
        %v1149 = vunpack.c.h.b16 %v1113
        %v1150 = vunpack.c.l.b16 %v1114
        %v1151 = vunpack.c.h.b16 %v1114
        %v1152 = vunpack.c.l.b16 %v1115
        %v1153 = vunpack.c.h.b16 %v1115
        %v1154 = vunpack.c.l.b16 %v1116
        %v1155 = vunpack.c.h.b16 %v1116
        %v1156 = vunpack.c.l.b16 %v1117
        %v1157 = vunpack.c.h.b16 %v1117
        %v1158 = vunpack.c.l.b16 %v1118
        %v1159 = vunpack.c.h.b16 %v1118
        %v1160 = vunpack.c.l.b16 %v1119
        %v1161 = vunpack.c.h.b16 %v1119
        %v1162 = vunpack.c.l.b16 %v1120
        %v1163 = vunpack.c.h.b16 %v1120
        %v1164 = vunpack.c.l.b16 %v1121
        %v1165 = vunpack.c.h.b16 %v1121
        %v1166 = vunpack.c.l.b16 %v1122
        %v1167 = vunpack.c.h.b16 %v1122
        %v1168 = vunpack.c.l.b16 %v1123
        %v1169 = vunpack.c.h.b16 %v1123
        %v1170 = vunpack.c.l.b16 %v1124
        %v1171 = vunpack.c.h.b16 %v1124
        %v1172 = vunpack.c.l.b16 %v1125
        %v1173 = vunpack.c.h.b16 %v1125
        %v1174 = vpack.c.b16 %v1142, %v1142
        %v1175 = vpack.c.b16 %v1143, %v1143
        %v1176 = vpack.c.b16 %v1144, %v1144
        %v1177 = vpack.c.b16 %v1145, %v1145
        %v1178 = vpack.c.b16 %v1146, %v1146
        %v1179 = vpack.c.b16 %v1147, %v1147
        %v1180 = vpack.c.b16 %v1148, %v1148
        %v1181 = vpack.c.b16 %v1149, %v1149
        %v1182 = vpack.c.b16 %v1150, %v1150
        %v1183 = vpack.c.b16 %v1151, %v1151
        %v1184 = vpack.c.b16 %v1152, %v1152
        %v1185 = vpack.c.b16 %v1153, %v1153
        %v1186 = vpack.c.b16 %v1154, %v1154
        %v1187 = vpack.c.b16 %v1155, %v1155
        %v1188 = vpack.c.b16 %v1156, %v1156
        %v1189 = vpack.c.b16 %v1157, %v1157
        %v1190 = vpack.c.b16 %v1158, %v1158
        %v1191 = vpack.c.b16 %v1159, %v1159
        %v1192 = vpack.c.b16 %v1160, %v1160
        %v1193 = vpack.c.b16 %v1161, %v1161
        %v1194 = vpack.c.b16 %v1162, %v1162
        %v1195 = vpack.c.b16 %v1163, %v1163
        %v1196 = vpack.c.b16 %v1164, %v1164
        %v1197 = vpack.c.b16 %v1165, %v1165
        %v1198 = vpack.c.b16 %v1166, %v1166
        %v1199 = vpack.c.b16 %v1167, %v1167
        %v1200 = vpack.c.b16 %v1168, %v1168
        %v1201 = vpack.c.b16 %v1169, %v1169
        %v1202 = vpack.c.b16 %v1170, %v1170
        %v1203 = vpack.c.b16 %v1171, %v1171
        %v1204 = vpack.c.b16 %v1172, %v1172
        %v1205 = vpack.c.b16 %v1173, %v1173
        %1238 = vst [vmem:[%s248] sm:$0xf] %v1174
        %1239 = vst [vmem:[%s248 + $0x4] sm:$0xf] %v1175
        %1240 = vst [vmem:[%s248 + $0x8] sm:$0xf] %v1176
        %1241 = vst [vmem:[%s248 + $0xc] sm:$0xf] %v1177
        %1242 = vst [vmem:[%s248 + $0x10] sm:$0xf] %v1178
        %1243 = vst [vmem:[%s248 + $0x14] sm:$0xf] %v1179
        %1244 = vst [vmem:[%s248 + $0x18] sm:$0xf] %v1180
        %1245 = vst [vmem:[%s248 + $0x1c] sm:$0xf] %v1181
        %1246 = vst [vmem:[%s248 + $0x20] sm:$0xf] %v1182
        %1247 = vst [vmem:[%s248 + $0x24] sm:$0xf] %v1183
        %1248 = vst [vmem:[%s248 + $0x28] sm:$0xf] %v1184
        %1249 = vst [vmem:[%s248 + $0x2c] sm:$0xf] %v1185
        %1250 = vst [vmem:[%s248 + $0x30] sm:$0xf] %v1186
        %1251 = vst [vmem:[%s248 + $0x34] sm:$0xf] %v1187
        %1252 = vst [vmem:[%s248 + $0x38] sm:$0xf] %v1188
        %1253 = vst [vmem:[%s248 + $0x3c] sm:$0xf] %v1189
        %1254 = vst [vmem:[%s248 + $0x40] sm:$0xf] %v1190
        %1255 = vst [vmem:[%s248 + $0x44] sm:$0xf] %v1191
        %1256 = vst [vmem:[%s248 + $0x48] sm:$0xf] %v1192
        %1257 = vst [vmem:[%s248 + $0x4c] sm:$0xf] %v1193
        %1258 = vst [vmem:[%s248 + $0x50] sm:$0xf] %v1194
        %1259 = vst [vmem:[%s248 + $0x54] sm:$0xf] %v1195
        %1260 = vst [vmem:[%s248 + $0x58] sm:$0xf] %v1196
        %1261 = vst [vmem:[%s248 + $0x5c] sm:$0xf] %v1197
        %1262 = vst [vmem:[%s248 + $0x60] sm:$0xf] %v1198
        %1263 = vst [vmem:[%s248 + $0x64] sm:$0xf] %v1199
        %1264 = vst [vmem:[%s248 + $0x68] sm:$0xf] %v1200
        %1265 = vst [vmem:[%s248 + $0x6c] sm:$0xf] %v1201
        %1266 = vst [vmem:[%s248 + $0x70] sm:$0xf] %v1202
        %1267 = vst [vmem:[%s248 + $0x74] sm:$0xf] %v1203
        %1268 = vst [vmem:[%s248 + $0x78] sm:$0xf] %v1204
        %1269 = vst [vmem:[%s248 + $0x7c] sm:$0xf] %v1205
        %s1270 = sand.u32 %s102, 1
        %s1271 = scalar_lea.sflag [#allocation4], %s1270
        %s1272 = sand.u32 %s102, 1
        %s1273 = smul.addr %s1272, 128
        %s1274 = scalar_lea.vmem [#allocation8], %s1273
        %s1275 = sand.u32 %s128, 1
        %s1276 = scalar_lea.sflag [#allocation10], %s1275
        %s1277 = sand.u32 %s128, 1
        %s1278 = smul.addr %s1277, 256
        %s1279 = scalar_lea.vmem [#allocation9], %s1278
        // Predicated region
        $region45: #{tpu_custom_call.1} parent=31 // pred_check
          %p1280 = pneg %p112
        $region46: #{tpu_custom_call.1} parent=31 // pred_check_branch
          %1282 = sbr.rel (%p1280) target = $region48
        $region47: #{tpu_custom_call.1} parent=31 // pred_region
          %s1283 = smul.u32 32, %s26
          %s1285 = ssub.s32 2048, 2048
          %1286 = vsyncadd %s1271, %s1285
          %s1287 = smul.addr %s1283, 64
          %s1288 = scalar_lea.hbm %s3, %s1287
          %s1289 = sshll.u32 %s1274, 4
          %s1290 = int_to_ptr.vmem [resolvable:$true] %s1289
          %1295 = dma.vmem_to_hbm [thread:$0]  %s1290, 2048, %s1288, %s1271, 64, 64, 4
        $region48: #{tpu_custom_call.1} parent=31 // pred_fallthru
          _
        // Predicated region
        $region49: #{tpu_custom_call.1} parent=31 // pred_check
          %p1296 = pneg %p138
        $region50: #{tpu_custom_call.1} parent=31 // pred_check_branch
          %1298 = sbr.rel (%p1296) target = $region52
        $region51: #{tpu_custom_call.1} parent=31 // pred_region
          %s1299 = smul.u32 32, %s26
          %s1301 = ssub.s32 4096, 4096
          %1302 = vsyncadd %s1276, %s1301
          %s1303 = smul.addr %s1299, 2
          %s1304 = smul.addr %s1303, 64
          %s1305 = scalar_lea.hbm %s4, %s1304
          %s1306 = sshll.u32 %s1279, 4
          %s1307 = int_to_ptr.vmem [resolvable:$true] %s1306
          %1312 = dma.vmem_to_hbm [thread:$0]  %s1307, 4096, %s1305, %s1276, 128, 128, 8
        $region52: #{tpu_custom_call.1} parent=31 // pred_fallthru
          _
      $region32: #{tpu_custom_call.1} parent=5 // pred_fallthru
        _
      %p1313 = scmp.le.s32.totalorder 2, %s21
      // Predicated region
      $region53: #{tpu_custom_call.1} parent=5 // pred_check
        %p1314 = pneg %p1313
      $region54: #{tpu_custom_call.1} parent=5 // pred_check_branch
        %1316 = sbr.rel (%p1314) target = $region56
      $region55: #{tpu_custom_call.1} parent=5 // pred_region
        %s1317 = ssub.s32 %s21, 2
        // Predicated region
        $region57: #{tpu_custom_call.1} parent=55 // pred_check
          %p1318 = pneg %p118
        $region58: #{tpu_custom_call.1} parent=55 // pred_check_branch
          %1320 = sbr.rel (%p1318) target = $region60
        $region59: #{tpu_custom_call.1} parent=55 // pred_region
          %s1321 = sand.u32 %s103, 1
          %s1322 = scalar_lea.sflag [#allocation4], %s1321
          %s1323 = sand.u32 %s103, 1
          %s1324 = smul.addr %s1323, 128
          %s1325 = scalar_lea.vmem [#allocation8], %s1324
          %1326 = dma.done %s1322, 2048
        $region60: #{tpu_custom_call.1} parent=55 // pred_fallthru
          _
        // Predicated region
        $region61: #{tpu_custom_call.1} parent=55 // pred_check
          %p1327 = pneg %p144
        $region62: #{tpu_custom_call.1} parent=55 // pred_check_branch
          %1329 = sbr.rel (%p1327) target = $region64
        $region63: #{tpu_custom_call.1} parent=55 // pred_region
          %s1330 = sand.u32 %s129, 1
          %s1331 = scalar_lea.sflag [#allocation10], %s1330
          %s1332 = sand.u32 %s129, 1
          %s1333 = smul.addr %s1332, 256
          %s1334 = scalar_lea.vmem [#allocation9], %s1333
          %1335 = dma.done %s1331, 4096
        $region64: #{tpu_custom_call.1} parent=55 // pred_fallthru
          _
      $region56: #{tpu_custom_call.1} parent=5 // pred_fallthru
        _
    $region6: #{tpu_custom_call.1} parent=1 // loop_footer
      %s25 = sadd.s32 1, %s21
    $region7: #{tpu_custom_call.1} parent=1 // loop_footer_branch
      %20 = sbr.rel target = $region3
    $region8: #{tpu_custom_call.1} parent=1 // loop_exit
      _
    %1336 = vsyncpa [#allocation3], 1
    %s1337 = scalar_lea.sflag [#allocation3], 1
    %1338 = vsyncpa %s1337, 1
    %1339 = vsyncpa [#allocation6], 1
    %1340 = vsyncpa [#allocation4], 1
    %s1341 = scalar_lea.sflag [#allocation4], 1
    %1342 = vsyncpa %s1341, 1
    %1343 = vsyncpa [#allocation10], 1
    %s1344 = scalar_lea.sflag [#allocation10], 1
    %1345 = vsyncpa %s1344, 1

</llo_original>
